<compile_context>
chip_gen: v7x
topology: tpu7x:2x2x1
jax: 0.10.0
libtpu: 0.0.40
codegen_flags: <defaults>
</compile_context>

<pallas_src>
import functools

import jax
import jax.numpy as jnp
from jax.experimental import pallas as pl
from jax.experimental.pallas import tpu as pltpu


def _round_up(a, m):
    return (a + m - 1) // m * m


def residual_block_kernel(x_cur_ref, x_halo_ref, wf_ref, b1_ref, w2_ref,
                          b2_ref, bd_ref, o_ref, *, k, dilation, tile_l, hp,
                          c_in, c_out, compute_dtype, per_tap1, per_tap2):
    """One grid step = (batch b, length-tile j).

    x_cur_ref  : (1, C_in_p, T)           current length tile of x (compute dtype)
    x_halo_ref : (1, C_in_p, 2*hp)        last 2*hp cols of previous tile (halo)
    wf_ref     : (2*C_out_p, K*C_in_p)    conv1 taps stacked + 1x1 downsample rows
    b1_ref     : (C_out_p, 1)  f32
    w2_ref     : (C_out_p, K*C_out_p)     conv2 taps stacked
    b2_ref     : (C_out_p, 1)  f32
    bd_ref     : (C_out_p, 1)  f32
    o_ref      : (1, C_out_p, T)
    """
    j = pl.program_id(1)
    T = tile_l
    w1w = T + hp                       # conv1 working width (multiple of 128)

    x_cur = x_cur_ref[0]               # (C_in_p, T)
    if hp > 0:
        # lane-aligned causal history; zeroed at the sequence start (conv1's
        # left zero padding).  Only 2*hp columns, not a whole tile.
        hx = x_halo_ref[0]
        hx = jnp.where(j > 0, hx, jnp.zeros_like(hx))
        x_ext = jnp.concatenate([hx, x_cur], axis=-1)   # (C_in_p, T + 2*hp)
    else:
        x_ext = x_cur

    # ---- conv1 (+ fused 1x1 downsample) -------------------------------------
    if per_tap1:
        # Wide channels: K accumulating MXU matmuls directly on shifted views
        # (no materialized tap stack -> no vst-slot pressure).
        h1f = None
        for jt in range(k):
            s = hp - (k - 1 - jt) * dilation
            part = jnp.dot(wf_ref[:c_out, jt * c_in:(jt + 1) * c_in],
                           x_ext[:, s:s + w1w],
                           preferred_element_type=jnp.float32)
            h1f = part if h1f is None else h1f + part
        res = jnp.dot(wf_ref[c_out:, (k - 1) * c_in:],
                      x_ext[:, 2 * hp:2 * hp + T],
                      preferred_element_type=jnp.float32) + bd_ref[...]
    else:
        # Small channels: stack taps along the contraction -> ONE MXU matmul
        # that also produces the 1x1-downsample residual rows.
        x1_stack = jnp.concatenate(
            [x_ext[:, hp - (k - 1 - jt) * dilation:
                      hp - (k - 1 - jt) * dilation + w1w]
             for jt in range(k)], axis=0)                # (K*C_in_p, T+hp)
        fused = jnp.dot(wf_ref[...], x1_stack,
                        preferred_element_type=jnp.float32)
        h1f = fused[:c_out]
        res = fused[c_out:, hp:] + bd_ref[...]           # lane-aligned slice

    h1f = jnp.maximum(h1f + b1_ref[...], 0.0)            # ReLU (dropout = id)
    if hp > 0:
        # conv2's left zero padding: zero h1 at global positions < 0.  Only
        # tile 0 is affected; iota/compare over a single (1, w1w) row.
        col = jax.lax.broadcasted_iota(jnp.int32, (1, w1w), 1)
        h1f = jnp.where(col >= hp - j * T, h1f, 0.0)
    h1 = h1f.astype(compute_dtype)

    # ---- conv2 ---------------------------------------------------------------
    if per_tap2:
        h2 = None
        for jt in range(k):
            s = hp - (k - 1 - jt) * dilation
            part = jnp.dot(w2_ref[:, jt * c_out:(jt + 1) * c_out],
                           h1[:, s:s + T],
                           preferred_element_type=jnp.float32)
            h2 = part if h2 is None else h2 + part
    else:
        x2_stack = jnp.concatenate(
            [h1[:, hp - (k - 1 - jt) * dilation:
                   hp - (k - 1 - jt) * dilation + T]
             for jt in range(k)], axis=0)                # (K*C_out_p, T)
        h2 = jnp.dot(w2_ref[...], x2_stack,
                     preferred_element_type=jnp.float32)
    h2 = jnp.maximum(h2 + b2_ref[...], 0.0)              # ReLU (dropout = id)

    o_ref[0] = (h2 + res).astype(o_ref.dtype)


def residual_block_pallas(x, w1, b1, w2, b2, wd=None, bd=None, *, dilation,
                          tile_l=None, compute_dtype=None):
    """TCN ResidualBlock forward (inference). x: (B, C_in, L) in PyTorch NCL.

    w1: (C_out, C_in, K), w2: (C_out, C_out, K), wd: (C_out, C_in, 1) or None.
    compute_dtype: matmul operand dtype (use jnp.bfloat16 on v6e/v7x).
    """
    B, C_in, L = x.shape
    C_out, _, K = w1.shape
    out_dtype = x.dtype
    if compute_dtype is None:
        compute_dtype = x.dtype
    halo = (K - 1) * dilation

    if wd is None:                 # in_channels == out_channels: identity residual
        wd = jnp.eye(C_out, C_in, dtype=w1.dtype)[:, :, None]
        bd = jnp.zeros((C_out,), w1.dtype)

    # --- channel / halo padding (sublane & lane alignment) --------------------
    C_in_p = _round_up(C_in, 8)
    C_out_p = _round_up(C_out, 8)
    hp = _round_up(halo, 128) if halo > 0 else 0     # lane-aligned history
    halo_w = 2 * hp if halo > 0 else 128             # halo-block width

    in_bytes = jnp.dtype(compute_dtype).itemsize
    out_bytes = jnp.dtype(out_dtype).itemsize

    # --- per-generation tile / VMEM budget ------------------------------------
    try:
        vmem_cap = int(pltpu.get_tpu_info().vmem_capacity_bytes)
    except Exception:
        vmem_cap = 64 * 1024 * 1024                  # conservative (v7x per-core)
    vmem_limit = max(min(int(vmem_cap * 0.75), 96 * 1024 * 1024),
                     32 * 1024 * 1024)
    # rough per-L-column VMEM cost: I/O double buffers + in-kernel temporaries
    per_col = (2 * C_in_p * in_bytes                 # x_cur double buffer
               + 2 * C_out_p * out_bytes             # out double buffer
               + (K + 1) * C_in_p * in_bytes         # x_ext + x1_stack
               + 2 * C_out_p * 4                     # fused rows (f32)
               + C_out_p * (4 + in_bytes)            # h1 (f32 + cast)
               + K * C_out_p * in_bytes              # x2_stack
               + 2 * C_out_p * 4)                    # h2 + res
    fixed = (2 * ((2 * C_out_p) * (K * C_in_p) + C_out_p * (K * C_out_p))
             * in_bytes                              # resident weights (2 bufs)
             + 2 * C_in_p * halo_w * in_bytes        # halo double buffer
             + (1 << 20))                            # slack
    budget = int(vmem_limit * 0.6)

    step = max(halo_w if halo > 0 else 0, 128)       # tile_l granularity
    if tile_l is None:
        tile_l = 2048 if vmem_cap > (100 << 20) else 1024   # v5e/v6e vs v7x
        tile_l = min(tile_l, _round_up(L, 128))
    tile_l = max(_round_up(tile_l, step), step)
    # shrink tile until the estimate fits (floor: halo block must fit one tile)
    while tile_l > step and fixed + per_col * tile_l > budget:
        tile_l = max(_round_up(max(tile_l // 2, step), step), step)

    L_pad = _round_up(L, tile_l)
    num_tiles = L_pad // tile_l

    # cast activations to compute dtype BEFORE the call (halves HBM->VMEM
    # traffic for bf16); accumulation stays f32 inside the kernel.
    x_p = jnp.pad(x, ((0, 0), (0, C_in_p - C_in), (0, L_pad - L)))
    x_p = x_p.astype(compute_dtype)

    w1_p = jnp.pad(w1, ((0, C_out_p - C_out), (0, C_in_p - C_in), (0, 0)))
    w2_p = jnp.pad(w2, ((0, C_out_p - C_out), (0, C_out_p - C_out), (0, 0)))
    wd_p = jnp.pad(wd, ((0, C_out_p - C_out), (0, C_in_p - C_in), (0, 0)))
    b1_p = jnp.pad(b1, (0, C_out_p - C_out)).astype(jnp.float32)[:, None]
    b2_p = jnp.pad(b2, (0, C_out_p - C_out)).astype(jnp.float32)[:, None]
    bd_p = jnp.pad(bd, (0, C_out_p - C_out)).astype(jnp.float32)[:, None]

    # stack K taps so each conv can be one matmul; fold the 1x1 downsample into
    # conv1's weight (it rides on the shift-0 tap block)
    w1_stack = jnp.transpose(w1_p, (0, 2, 1)).reshape(C_out_p, K * C_in_p)
    w2_stack = jnp.transpose(w2_p, (0, 2, 1)).reshape(C_out_p, K * C_out_p)
    wd_stack = jnp.zeros((C_out_p, K * C_in_p), w1.dtype)
    wd_stack = wd_stack.at[:, (K - 1) * C_in_p:].set(wd_p[:, :, 0])
    w_fused = jnp.concatenate([w1_stack, wd_stack], axis=0).astype(compute_dtype)
    w2_stack = w2_stack.astype(compute_dtype)

    per_tap1 = C_in_p >= 128           # contraction fills the MXU per tap
    per_tap2 = C_out_p >= 128

    kernel = functools.partial(
        residual_block_kernel, k=K, dilation=dilation, tile_l=tile_l, hp=hp,
        c_in=C_in_p, c_out=C_out_p, compute_dtype=compute_dtype,
        per_tap1=per_tap1, per_tap2=per_tap2)

    r = tile_l // halo_w if halo > 0 else 0          # halo blocks per tile

    def halo_map(b, j):
        if halo > 0:
            return (b, 0, jnp.maximum(j * r - 1, 0))  # tail block of tile j-1
        return (b, 0, 0)

    out = pl.pallas_call(
        kernel,
        out_shape=jax.ShapeDtypeStruct((B, C_out_p, L_pad), out_dtype),
        grid=(B, num_tiles),
        in_specs=[
            pl.BlockSpec((1, C_in_p, tile_l), lambda b, j: (b, 0, j)),
            pl.BlockSpec((1, C_in_p, halo_w), halo_map),
            pl.BlockSpec((2 * C_out_p, K * C_in_p), lambda b, j: (0, 0)),
            pl.BlockSpec((C_out_p, 1), lambda b, j: (0, 0)),
            pl.BlockSpec((C_out_p, K * C_out_p), lambda b, j: (0, 0)),
            pl.BlockSpec((C_out_p, 1), lambda b, j: (0, 0)),
            pl.BlockSpec((C_out_p, 1), lambda b, j: (0, 0)),
        ],
        out_specs=pl.BlockSpec((1, C_out_p, tile_l), lambda b, j: (b, 0, j)),
        compiler_params=pltpu.CompilerParams(
            dimension_semantics=("parallel", "parallel"),
            vmem_limit_bytes=vmem_limit),
    )(x_p, x_p, w_fused, b1_p, w2_stack, b2_p, bd_p)

    return out[:, :C_out, :L]


# ---------------- pure-JAX reference (mirrors the PyTorch forward) -----------
def _conv1d_ref(x, w, b, dilation, padding):
    out = jax.lax.conv_general_dilated(
        x, w, window_strides=(1,), padding=[(padding, padding)],
        rhs_dilation=(dilation,), dimension_numbers=("NCH", "OIH", "NCH"))
    return out + b[None, :, None]


def residual_block_ref(x, w1, b1, w2, b2, wd, bd, *, kernel_size, dilation):
    pad = (kernel_size - 1) * dilation
    out = _conv1d_ref(x, w1, b1, dilation, pad)
    if pad > 0:
        out = out[:, :, :-pad]
    out = jnp.maximum(out, 0.0)                   # dropout = identity (eval)
    out = _conv1d_ref(out, w2, b2, dilation, pad)
    if pad > 0:
        out = out[:, :, :-pad]
    out = jnp.maximum(out, 0.0)
    residual = _conv1d_ref(x, wd, bd, 1, 0)[:, :, :out.shape[2]]
    return out + residual


if __name__ == "__main__":
    key = jax.random.PRNGKey(0)
    ks = jax.random.split(key, 12)

    # --- small-channel config (stacked single-matmul path) -------------------
    B, C_in, C_out, L = 2, 4, 8, 16
    K, dilation = 3, 2
    w1 = jax.random.normal(ks[0], (C_out, C_in, K), jnp.float32) * 0.2
    b1 = jax.random.normal(ks[1], (C_out,), jnp.float32) * 0.1
    w2 = jax.random.normal(ks[2], (C_out, C_out, K), jnp.float32) * 0.2
    b2 = jax.random.normal(ks[3], (C_out,), jnp.float32) * 0.1
    wd = jax.random.normal(ks[4], (C_out, C_in, 1), jnp.float32) * 0.2
    bd = jax.random.normal(ks[5], (C_out,), jnp.float32) * 0.1
    x = jax.random.normal(ks[6], (B, C_in, L), jnp.float32)

    ref = residual_block_ref(x, w1, b1, w2, b2, wd, bd,
                             kernel_size=K, dilation=dilation)

    out_f32 = jax.block_until_ready(
        residual_block_pallas(x, w1, b1, w2, b2, wd, bd, dilation=dilation,
                              compute_dtype=jnp.float32))
    assert out_f32.shape == (B, C_out, L)
    assert jnp.allclose(out_f32, ref, atol=1e-4, rtol=1e-4), "f32 mismatch"

    # bf16 MXU operands (v6e/v7x path), f32 accumulation
    out_bf16 = jax.block_until_ready(
        residual_block_pallas(x, w1, b1, w2, b2, wd, bd, dilation=dilation,
                              compute_dtype=jnp.bfloat16))
    assert jnp.allclose(out_bf16, ref, atol=1e-1, rtol=1e-1), "bf16 mismatch"

    # --- multi-tile length (causal halo crosses L tiles) ----------------------
    L2 = 700
    x2 = jax.random.normal(ks[7], (B, C_in, L2), jnp.float32)
    ref2 = residual_block_ref(x2, w1, b1, w2, b2, wd, bd,
                              kernel_size=K, dilation=dilation)
    out2 = jax.block_until_ready(
        residual_block_pallas(x2, w1, b1, w2, b2, wd, bd, dilation=dilation,
                              tile_l=256, compute_dtype=jnp.float32))
    assert out2.shape == (B, C_out, L2)
    assert jnp.allclose(out2, ref2, atol=1e-4, rtol=1e-4), "tiled mismatch"

    # --- wide-channel config (per-tap MXU path, identity residual) ------------
    C3, L3, K3, d3 = 128, 384, 3, 1
    w1b = jax.random.normal(ks[8], (C3, C3, K3), jnp.float32) * 0.05
    b1b = jax.random.normal(ks[9], (C3,), jnp.float32) * 0.1
    w2b = jax.random.normal(ks[10], (C3, C3, K3), jnp.float32) * 0.05
    b2b = jax.random.normal(ks[11], (C3,), jnp.float32) * 0.1
    x3 = jax.random.normal(ks[7], (1, C3, L3), jnp.float32)
    wd_eye = jnp.eye(C3, dtype=jnp.float32)[:, :, None]
    bd_zero = jnp.zeros((C3,), jnp.float32)
    ref3 = residual_block_ref(x3, w1b, b1b, w2b, b2b, wd_eye, bd_zero,
                              kernel_size=K3, dilation=d3)
    out3 = jax.block_until_ready(
        residual_block_pallas(x3, w1b, b1b, w2b, b2b, None, None, dilation=d3,
                              tile_l=256, compute_dtype=jnp.float32))
    assert out3.shape == (1, C3, L3)
    assert jnp.allclose(out3, ref3, atol=2e-3, rtol=2e-3), "per-tap mismatch"

    print("KERNEL_OK")
</pallas_src>

<mosaic_0001>
module attributes {stable_mosaic.version = 11 : i64} {
  func.func @residual_block_kernel(%arg0: i32, %arg1: i32, %arg2: memref<1x8x256xf32, #tpu.memory_space<vmem>>, %arg3: memref<1x8x256xf32, #tpu.memory_space<vmem>>, %arg4: memref<16x24xf32, #tpu.memory_space<vmem>>, %arg5: memref<8x1xf32, #tpu.memory_space<vmem>>, %arg6: memref<8x24xf32, #tpu.memory_space<vmem>>, %arg7: memref<8x1xf32, #tpu.memory_space<vmem>>, %arg8: memref<8x1xf32, #tpu.memory_space<vmem>>, %arg9: memref<1x8x256xf32, #tpu.memory_space<vmem>>) attributes {dimension_semantics = [#tpu.dimension_semantics<parallel>, #tpu.dimension_semantics<parallel>], iteration_bounds = array<i64: 2, 1>, scalar_prefetch = 0 : i64, scratch_operands = 0 : i64, tpu.core_type = #tpu.core_type<tc>, window_params = [{transform_indices = @transform_0, window_bounds = array<i64: 1, 8, 256>}, {transform_indices = @transform_1, window_bounds = array<i64: 1, 8, 256>}, {pipeline_mode = #tpu.pipeline_mode<synchronous>, transform_indices = @transform_2, window_bounds = array<i64: 16, 24>}, {pipeline_mode = #tpu.pipeline_mode<synchronous>, transform_indices = @transform_3, window_bounds = array<i64: 8, 1>}, {pipeline_mode = #tpu.pipeline_mode<synchronous>, transform_indices = @transform_4, window_bounds = array<i64: 8, 24>}, {pipeline_mode = #tpu.pipeline_mode<synchronous>, transform_indices = @transform_5, window_bounds = array<i64: 8, 1>}, {pipeline_mode = #tpu.pipeline_mode<synchronous>, transform_indices = @transform_6, window_bounds = array<i64: 8, 1>}, {transform_indices = @transform_7, window_bounds = array<i64: 1, 8, 256>}]} {
    %c0 = arith.constant 0 : index
    %c0_0 = arith.constant 0 : index
    %c0_1 = arith.constant 0 : index
    %0 = vector.load %arg2[%c0, %c0_0, %c0_1] : memref<1x8x256xf32, #tpu.memory_space<vmem>>, vector<1x8x256xf32>
    %1 = vector.shape_cast %0 : vector<1x8x256xf32> to vector<8x256xf32>
    %c0_2 = arith.constant 0 : index
    %c0_3 = arith.constant 0 : index
    %c0_4 = arith.constant 0 : index
    %2 = vector.load %arg3[%c0_2, %c0_3, %c0_4] : memref<1x8x256xf32, #tpu.memory_space<vmem>>, vector<1x8x256xf32>
    %3 = vector.shape_cast %2 : vector<1x8x256xf32> to vector<8x256xf32>
    %c0_i32 = arith.constant 0 : i32
    %4 = arith.cmpi sgt, %arg1, %c0_i32 : i32
    %cst = arith.constant 0.000000e+00 : f32
    %5 = vector.broadcast %cst : f32 to vector<8x256xf32>
    %6 = arith.select %4, %3, %5 : vector<8x256xf32>
    %7 = tpu.concatenate %6, %1 in 1 : vector<8x256xf32>, vector<8x256xf32> -> vector<8x512xf32>
    %8 = vector.extract_strided_slice %7 {offsets = [0, 124], sizes = [8, 384], strides = [1, 1]} : vector<8x512xf32> to vector<8x384xf32>
    %9 = vector.extract_strided_slice %7 {offsets = [0, 126], sizes = [8, 384], strides = [1, 1]} : vector<8x512xf32> to vector<8x384xf32>
    %10 = vector.extract_strided_slice %7 {offsets = [0, 128], sizes = [8, 384], strides = [1, 1]} : vector<8x512xf32> to vector<8x384xf32>
    %11 = tpu.concatenate %8, %9, %10 in 0 : vector<8x384xf32>, vector<8x384xf32>, vector<8x384xf32> -> vector<24x384xf32>
    %c0_5 = arith.constant 0 : index
    %c0_6 = arith.constant 0 : index
    %12 = vector.load %arg4[%c0_5, %c0_6] : memref<16x24xf32, #tpu.memory_space<vmem>>, vector<16x24xf32>
    %cst_7 = arith.constant dense<0.000000e+00> : vector<16x384xf32>
    %13 = tpu.matmul %12, %11, %cst_7 {dimension_numbers = #tpu.dot_dimension_numbers<[1], [0], [0], [1], [0, 0, 1, 1], [], []>} : vector<16x24xf32>, vector<24x384xf32>, vector<16x384xf32> -> vector<16x384xf32>
    %14 = vector.extract_strided_slice %13 {offsets = [0, 0], sizes = [8, 384], strides = [1, 1]} : vector<16x384xf32> to vector<8x384xf32>
    %15 = vector.extract_strided_slice %13 {offsets = [8, 128], sizes = [8, 256], strides = [1, 1]} : vector<16x384xf32> to vector<8x256xf32>
    %c0_8 = arith.constant 0 : index
    %c0_9 = arith.constant 0 : index
    %16 = vector.load %arg8[%c0_8, %c0_9] : memref<8x1xf32, #tpu.memory_space<vmem>>, vector<8x1xf32>
    %17 = vector.broadcast %16 : vector<8x1xf32> to vector<8x256xf32>
    %18 = arith.addf %15, %17 : vector<8x256xf32>
    %c0_10 = arith.constant 0 : index
    %c0_11 = arith.constant 0 : index
    %19 = vector.load %arg5[%c0_10, %c0_11] : memref<8x1xf32, #tpu.memory_space<vmem>>, vector<8x1xf32>
    %20 = vector.broadcast %19 : vector<8x1xf32> to vector<8x384xf32>
    %21 = arith.addf %14, %20 : vector<8x384xf32>
    %cst_12 = arith.constant 0.000000e+00 : f32
    %22 = vector.broadcast %cst_12 : f32 to vector<8x384xf32>
    %23 = arith.maximumf %21, %22 : vector<8x384xf32>
    %24 = tpu.iota {dimensions = array<i32: 1>} : vector<1x384xi32>
    %c256_i32 = arith.constant 256 : i32
    %25 = arith.muli %arg1, %c256_i32 : i32
    %c128_i32 = arith.constant 128 : i32
    %26 = arith.subi %c128_i32, %25 : i32
    %27 = vector.broadcast %26 : i32 to vector<1x384xi32>
    %28 = arith.cmpi sge, %24, %27 : vector<1x384xi32>
    %cst_13 = arith.constant 0.000000e+00 : f32
    %29 = vector.shape_cast %28 : vector<1x384xi1> to vector<1x384xi1>
    %30 = vector.broadcast %29 : vector<1x384xi1> to vector<8x384xi1>
    %31 = vector.broadcast %cst_13 : f32 to vector<8x384xf32>
    %32 = arith.select %30, %23, %31 : vector<8x384xi1>, vector<8x384xf32>
    %33 = vector.extract_strided_slice %32 {offsets = [0, 124], sizes = [8, 256], strides = [1, 1]} : vector<8x384xf32> to vector<8x256xf32>
    %34 = vector.extract_strided_slice %32 {offsets = [0, 126], sizes = [8, 256], strides = [1, 1]} : vector<8x384xf32> to vector<8x256xf32>
    %35 = vector.extract_strided_slice %32 {offsets = [0, 128], sizes = [8, 256], strides = [1, 1]} : vector<8x384xf32> to vector<8x256xf32>
    %36 = tpu.concatenate %33, %34, %35 in 0 : vector<8x256xf32>, vector<8x256xf32>, vector<8x256xf32> -> vector<24x256xf32>
    %c0_14 = arith.constant 0 : index
    %c0_15 = arith.constant 0 : index
    %37 = vector.load %arg6[%c0_14, %c0_15] : memref<8x24xf32, #tpu.memory_space<vmem>>, vector<8x24xf32>
    %cst_16 = arith.constant dense<0.000000e+00> : vector<8x256xf32>
    %38 = tpu.matmul %37, %36, %cst_16 {dimension_numbers = #tpu.dot_dimension_numbers<[1], [0], [0], [1], [0, 0, 1, 1], [], []>} : vector<8x24xf32>, vector<24x256xf32>, vector<8x256xf32> -> vector<8x256xf32>
    %c0_17 = arith.constant 0 : index
    %c0_18 = arith.constant 0 : index
    %39 = vector.load %arg7[%c0_17, %c0_18] : memref<8x1xf32, #tpu.memory_space<vmem>>, vector<8x1xf32>
    %40 = vector.broadcast %39 : vector<8x1xf32> to vector<8x256xf32>
    %41 = arith.addf %38, %40 : vector<8x256xf32>
    %cst_19 = arith.constant 0.000000e+00 : f32
    %42 = vector.broadcast %cst_19 : f32 to vector<8x256xf32>
    %43 = arith.maximumf %41, %42 : vector<8x256xf32>
    %44 = arith.addf %43, %18 : vector<8x256xf32>
    %c0_20 = arith.constant 0 : index
    %c0_21 = arith.constant 0 : index
    %c0_22 = arith.constant 0 : index
    %45 = vector.load %arg9[%c0_20, %c0_21, %c0_22] : memref<1x8x256xf32, #tpu.memory_space<vmem>>, vector<1x8x256xf32>
    %46 = vector.shape_cast %45 : vector<1x8x256xf32> to vector<8x256xf32>
    %47 = vector.shape_cast %44 : vector<8x256xf32> to vector<1x8x256xf32>
    tpu.vector_store %arg9[%c0_20, %c0_21, %c0_22], %47 {strides = array<i32>} : memref<1x8x256xf32, #tpu.memory_space<vmem>>, vector<1x8x256xf32>,
    return
  }
  func.func @transform_0(%arg0: i32, %arg1: i32) -> (i32, i32, i32) {
    %c0_i32 = arith.constant 0 : i32
    %c0_i32_0 = arith.constant 0 : i32
    return %arg0, %c0_i32, %arg1 : i32, i32, i32
  }
  func.func @transform_1(%arg0: i32, %arg1: i32) -> (i32, i32, i32) {
    %c1_i32 = arith.constant 1 : i32
    %0 = arith.muli %arg1, %c1_i32 : i32
    %c1_i32_0 = arith.constant 1 : i32
    %1 = arith.subi %0, %c1_i32_0 : i32
    %c0_i32 = arith.constant 0 : i32
    %2 = arith.maxsi %1, %c0_i32 : i32
    %c0_i32_1 = arith.constant 0 : i32
    %c0_i32_2 = arith.constant 0 : i32
    return %arg0, %c0_i32_1, %2 : i32, i32, i32
  }
  func.func @transform_2(%arg0: i32, %arg1: i32) -> (i32, i32) {
    %c0_i32 = arith.constant 0 : i32
    %c0_i32_0 = arith.constant 0 : i32
    %c0_i32_1 = arith.constant 0 : i32
    return %c0_i32, %c0_i32_0 : i32, i32
  }
  func.func @transform_3(%arg0: i32, %arg1: i32) -> (i32, i32) {
    %c0_i32 = arith.constant 0 : i32
    %c0_i32_0 = arith.constant 0 : i32
    %c0_i32_1 = arith.constant 0 : i32
    return %c0_i32, %c0_i32_0 : i32, i32
  }
  func.func @transform_4(%arg0: i32, %arg1: i32) -> (i32, i32) {
    %c0_i32 = arith.constant 0 : i32
    %c0_i32_0 = arith.constant 0 : i32
    %c0_i32_1 = arith.constant 0 : i32
    return %c0_i32, %c0_i32_0 : i32, i32
  }
  func.func @transform_5(%arg0: i32, %arg1: i32) -> (i32, i32) {
    %c0_i32 = arith.constant 0 : i32
    %c0_i32_0 = arith.constant 0 : i32
    %c0_i32_1 = arith.constant 0 : i32
    return %c0_i32, %c0_i32_0 : i32, i32
  }
  func.func @transform_6(%arg0: i32, %arg1: i32) -> (i32, i32) {
    %c0_i32 = arith.constant 0 : i32
    %c0_i32_0 = arith.constant 0 : i32
    %c0_i32_1 = arith.constant 0 : i32
    return %c0_i32, %c0_i32_0 : i32, i32
  }
  func.func @transform_7(%arg0: i32, %arg1: i32) -> (i32, i32, i32) {
    %c0_i32 = arith.constant 0 : i32
    %c0_i32_0 = arith.constant 0 : i32
    return %arg0, %c0_i32, %arg1 : i32, i32, i32
  }
}

</mosaic_0001>

<llo_original>
// kernel: tpu_custom_call.1
$region0: #{tpu_custom_call.1}
  #allocation0 [shape = 'u32[]', space=smem, size = 0x4, offset = 0x4, fixed_abs, tag = 'smem constant byte address 0x4 - core index']
  #allocation1 [shape = 'u32[144,128]{1,0:T(1,128)}', space=vmem, size = 0x12000, scoped, tag = 'internal scratch']
  %s0 = inlined_call_operand.hbm [shape: f32[2,8,256], index: 0, kind: input, shape index: {}]
  %s1 = inlined_call_operand.hbm [shape: f32[2,8,256], index: 1, kind: input, shape index: {}]
  %s2 = inlined_call_operand.vmem [shape: f32[16,24], index: 2, kind: input, shape index: {}]
  %s3 = inlined_call_operand.vmem [shape: f32[8,1], index: 3, kind: input, shape index: {}]
  %s4 = inlined_call_operand.vmem [shape: f32[8,24], index: 4, kind: input, shape index: {}]
  %s5 = inlined_call_operand.vmem [shape: f32[8,1], index: 5, kind: input, shape index: {}]
  %s6 = inlined_call_operand.vmem [shape: f32[8,1], index: 6, kind: input, shape index: {}]
  %s7 = inlined_call_operand.hbm [shape: f32[2,8,256], index: 7, kind: output, shape index: {}]
  %s8 = sld [smem:[#allocation0]]
  $region69: #{tpu_custom_call.1} parent=0
    _
  %s10 = ssub.s32 1, %s8
  %s11 = scalar_select 0, %s10, %s8
  $region1: #{tpu_custom_call.1} parent=0
    #allocation2 [shape = 'u8[16384]{0}', space=vmem, size = 0x4000, scoped, tag = 'input window, operand 0']
    #allocation3 [shape = 's32[2]{0}', space=sflag, size = 0x8, scoped, tag = 'scoped memory for tpu_custom_call.1']
    #allocation4 [shape = 's32[2]{0}', space=sflag, size = 0x8, scoped, tag = 'scoped memory for tpu_custom_call.1']
    #allocation5 [shape = 'u8[16384]{0}', space=vmem, size = 0x4000, scoped, tag = 'input window, operand 1']
    #allocation6 [shape = 's32[2]{0}', space=sflag, size = 0x8, scoped, tag = 'scoped memory for tpu_custom_call.1']
    #allocation7 [shape = 'u8[16384]{0}', space=vmem, size = 0x4000, scoped, tag = 'output window, operand 0']
    %12 = vsyncpa [#allocation3], 0
    %s13 = scalar_lea.sflag [#allocation3], 1
    %14 = vsyncpa %s13, 0
    %15 = vsyncpa [#allocation6], 0
    %s16 = scalar_lea.sflag [#allocation6], 1
    %17 = vsyncpa %s16, 0
    %18 = vsyncpa [#allocation4], 0
    %s19 = scalar_lea.sflag [#allocation4], 1
    %20 = vsyncpa %s19, 0
    loop: start=0, step=1, limit=4
    $region2: #{tpu_custom_call.1} parent=1 // loop_pre_header
      _
    $region3: #{tpu_custom_call.1} parent=1 // loop_header
      %s22 = sphi 0, %s26
      %p23 = scmp.ge.s32.totalorder %s22, 4
      %s29 = sphi 0, %s41
      %s30 = sphi 0, %s37
      %s31 = sphi 0, %s29
      %s32 = sphi 0, %s30
      %s33 = sphi 0, %s31
      %s34 = sphi 0, %s32
      %s46 = sphi 0, %s48
      %s49 = sphi 0, %s46
      %s50 = sphi 0, %s49
      %s66 = sphi 0, %s50
      %s80 = sphi 0, %s82
      %s83 = sphi 0, %s80
      %s84 = sphi 0, %s83
      %s100 = sphi 0, %s84
      %s104 = sphi 0, %s104
      %s106 = sphi 0, %s104
      %s107 = sphi 0, %s106
      %s121 = sphi 0, %s107
      %s125 = sphi 0, %s125
      %s127 = sphi 0, %s125
      %s128 = sphi 0, %s127
      %s142 = sphi 0, %s128
      %s146 = sphi 0, %s146
      %s148 = sphi 0, %s146
      %s149 = sphi 0, %s148
      %s163 = sphi 0, %s149
      %s167 = sphi 0, %s167
      %s169 = sphi 0, %s167
      %s170 = sphi 0, %s169
      %s184 = sphi 0, %s170
      %s188 = sphi 0, %s188
      %s190 = sphi 0, %s188
      %s191 = sphi 0, %s190
      %s205 = sphi 0, %s191
      %s213 = sphi 0, %s215
      %s216 = sphi 0, %s213
      %s217 = sphi 0, %s216
      %s233 = sphi 0, %s217
    $region4: #{tpu_custom_call.1} parent=1 // loop_header_branch
      %25 = sbr.rel (%p23) target = $region8
    $region5: #{tpu_custom_call.1} parent=1 // loop_body
      %s27 = ssub.s32 %s22, 1
      %s28 = ssub.s32 %s22, 2
      %s35 = sadd.s32 1, %s30
      %p36 = scmp.ge.s32.totalorder %s35, 1
      %s37 = scalar_select %p36, 0, %s35
      %s38 = sadd.s32 1, %s29
      %s39 = scalar_select %p36, %s38, %s29
      %p40 = scmp.ge.s32.totalorder %s39, 2
      %s41 = scalar_select %p40, 0, %s39
      %s42 = ssub.s32 %s29, %s41
      %s43 = ssub.s32 %s30, %s37
      %s44 = sor.u32 %s42, %s43
      %p45 = scmp.eq.s32.totalorder %s44, 0
      %s47 = sadd.s32 %s46, 1
      %s48 = scalar_select %p45, %s46, %s47
      %p51 = pneg %p45
      %p52 = scmp.eq.s32.totalorder %s22, 1
      %p53 = por %p51, %p52
      %p54 = scmp.ne.s32.totalorder %s46, %s49
      %p55 = scmp.eq.s32.totalorder %s22, 0
      %p56 = por %p54, %p55
      %p57 = scmp.ne.s32.totalorder %s46, %s49
      %p58 = scmp.eq.s32.totalorder %s27, 1
      %p59 = por %p57, %p58
      %p60 = scmp.ne.s32.totalorder %s49, %s50
      %p61 = scmp.eq.s32.totalorder %s27, 0
      %p62 = por %p60, %p61
      %p63 = scmp.ne.s32.totalorder %s49, %s50
      %p64 = scmp.eq.s32.totalorder %s28, 1
      %p65 = por %p63, %p64
      %p67 = scmp.ne.s32.totalorder %s50, %s66
      %p68 = scmp.eq.s32.totalorder %s28, 0
      %p69 = por %p67, %p68
      %s70 = ssub.s32 %s30, 1
      %p71 = scmp.gt.s32.totalorder %s70, 0
      %s72 = scalar_select %p71, %s70, 0
      %s73 = ssub.s32 %s37, 1
      %p74 = scmp.gt.s32.totalorder %s73, 0
      %s75 = scalar_select %p74, %s73, 0
      %s76 = ssub.s32 %s29, %s41
      %s77 = ssub.s32 %s72, %s75
      %s78 = sor.u32 %s76, %s77
      %p79 = scmp.eq.s32.totalorder %s78, 0
      %s81 = sadd.s32 %s80, 1
      %s82 = scalar_select %p79, %s80, %s81
      %p85 = pneg %p79
      %p86 = scmp.eq.s32.totalorder %s22, 1
      %p87 = por %p85, %p86
      %p88 = scmp.ne.s32.totalorder %s80, %s83
      %p89 = scmp.eq.s32.totalorder %s22, 0
      %p90 = por %p88, %p89
      %p91 = scmp.ne.s32.totalorder %s80, %s83
      %p92 = scmp.eq.s32.totalorder %s27, 1
      %p93 = por %p91, %p92
      %p94 = scmp.ne.s32.totalorder %s83, %s84
      %p95 = scmp.eq.s32.totalorder %s27, 0
      %p96 = por %p94, %p95
      %p97 = scmp.ne.s32.totalorder %s83, %s84
      %p98 = scmp.eq.s32.totalorder %s28, 1
      %p99 = por %p97, %p98
      %p101 = scmp.ne.s32.totalorder %s84, %s100
      %p102 = scmp.eq.s32.totalorder %s28, 0
      %p103 = por %p101, %p102
      %s105 = sadd.s32 %s104, 1
      %p108 = scmp.eq.s32.totalorder %s22, 1
      %p109 = scmp.ne.s32.totalorder %s104, %s106
      %p110 = scmp.eq.s32.totalorder %s22, 0
      %p111 = por %p109, %p110
      %p112 = scmp.ne.s32.totalorder %s104, %s106
      %p113 = scmp.eq.s32.totalorder %s27, 1
      %p114 = por %p112, %p113
      %p115 = scmp.ne.s32.totalorder %s106, %s107
      %p116 = scmp.eq.s32.totalorder %s27, 0
      %p117 = por %p115, %p116
      %p118 = scmp.ne.s32.totalorder %s106, %s107
      %p119 = scmp.eq.s32.totalorder %s28, 1
      %p120 = por %p118, %p119
      %p122 = scmp.ne.s32.totalorder %s107, %s121
      %p123 = scmp.eq.s32.totalorder %s28, 0
      %p124 = por %p122, %p123
      %s126 = sadd.s32 %s125, 1
      %p129 = scmp.eq.s32.totalorder %s22, 1
      %p130 = scmp.ne.s32.totalorder %s125, %s127
      %p131 = scmp.eq.s32.totalorder %s22, 0
      %p132 = por %p130, %p131
      %p133 = scmp.ne.s32.totalorder %s125, %s127
      %p134 = scmp.eq.s32.totalorder %s27, 1
      %p135 = por %p133, %p134
      %p136 = scmp.ne.s32.totalorder %s127, %s128
      %p137 = scmp.eq.s32.totalorder %s27, 0
      %p138 = por %p136, %p137
      %p139 = scmp.ne.s32.totalorder %s127, %s128
      %p140 = scmp.eq.s32.totalorder %s28, 1
      %p141 = por %p139, %p140
      %p143 = scmp.ne.s32.totalorder %s128, %s142
      %p144 = scmp.eq.s32.totalorder %s28, 0
      %p145 = por %p143, %p144
      %s147 = sadd.s32 %s146, 1
      %p150 = scmp.eq.s32.totalorder %s22, 1
      %p151 = scmp.ne.s32.totalorder %s146, %s148
      %p152 = scmp.eq.s32.totalorder %s22, 0
      %p153 = por %p151, %p152
      %p154 = scmp.ne.s32.totalorder %s146, %s148
      %p155 = scmp.eq.s32.totalorder %s27, 1
      %p156 = por %p154, %p155
      %p157 = scmp.ne.s32.totalorder %s148, %s149
      %p158 = scmp.eq.s32.totalorder %s27, 0
      %p159 = por %p157, %p158
      %p160 = scmp.ne.s32.totalorder %s148, %s149
      %p161 = scmp.eq.s32.totalorder %s28, 1
      %p162 = por %p160, %p161
      %p164 = scmp.ne.s32.totalorder %s149, %s163
      %p165 = scmp.eq.s32.totalorder %s28, 0
      %p166 = por %p164, %p165
      %s168 = sadd.s32 %s167, 1
      %p171 = scmp.eq.s32.totalorder %s22, 1
      %p172 = scmp.ne.s32.totalorder %s167, %s169
      %p173 = scmp.eq.s32.totalorder %s22, 0
      %p174 = por %p172, %p173
      %p175 = scmp.ne.s32.totalorder %s167, %s169
      %p176 = scmp.eq.s32.totalorder %s27, 1
      %p177 = por %p175, %p176
      %p178 = scmp.ne.s32.totalorder %s169, %s170
      %p179 = scmp.eq.s32.totalorder %s27, 0
      %p180 = por %p178, %p179
      %p181 = scmp.ne.s32.totalorder %s169, %s170
      %p182 = scmp.eq.s32.totalorder %s28, 1
      %p183 = por %p181, %p182
      %p185 = scmp.ne.s32.totalorder %s170, %s184
      %p186 = scmp.eq.s32.totalorder %s28, 0
      %p187 = por %p185, %p186
      %s189 = sadd.s32 %s188, 1
      %p192 = scmp.eq.s32.totalorder %s22, 1
      %p193 = scmp.ne.s32.totalorder %s188, %s190
      %p194 = scmp.eq.s32.totalorder %s22, 0
      %p195 = por %p193, %p194
      %p196 = scmp.ne.s32.totalorder %s188, %s190
      %p197 = scmp.eq.s32.totalorder %s27, 1
      %p198 = por %p196, %p197
      %p199 = scmp.ne.s32.totalorder %s190, %s191
      %p200 = scmp.eq.s32.totalorder %s27, 0
      %p201 = por %p199, %p200
      %p202 = scmp.ne.s32.totalorder %s190, %s191
      %p203 = scmp.eq.s32.totalorder %s28, 1
      %p204 = por %p202, %p203
      %p206 = scmp.ne.s32.totalorder %s191, %s205
      %p207 = scmp.eq.s32.totalorder %s28, 0
      %p208 = por %p206, %p207
      %s209 = ssub.s32 %s29, %s41
      %s210 = ssub.s32 %s30, %s37
      %s211 = sor.u32 %s209, %s210
      %p212 = scmp.eq.s32.totalorder %s211, 0
      %s214 = sadd.s32 %s213, 1
      %s215 = scalar_select %p212, %s213, %s214
      %p218 = pneg %p212
      %p219 = scmp.eq.s32.totalorder %s22, 1
      %p220 = por %p218, %p219
      %p221 = scmp.ne.s32.totalorder %s213, %s216
      %p222 = scmp.eq.s32.totalorder %s22, 0
      %p223 = por %p221, %p222
      %p224 = scmp.ne.s32.totalorder %s213, %s216
      %p225 = scmp.eq.s32.totalorder %s27, 1
      %p226 = por %p224, %p225
      %p227 = scmp.ne.s32.totalorder %s216, %s217
      %p228 = scmp.eq.s32.totalorder %s27, 0
      %p229 = por %p227, %p228
      %p230 = scmp.ne.s32.totalorder %s216, %s217
      %p231 = scmp.eq.s32.totalorder %s28, 1
      %p232 = por %p230, %p231
      %p234 = scmp.ne.s32.totalorder %s217, %s233
      %p235 = scmp.eq.s32.totalorder %s28, 0
      %p236 = por %p234, %p235
      %p237 = scmp.le.s32.totalorder 1, %s22
      %p238 = scmp.lt.s32.totalorder %s22, 3
      %p239 = pnand %p237, %p238
      %p240 = pneg %p239
      // Predicated region
      $region9: #{tpu_custom_call.1} parent=5 // pred_check
        _
      $region10: #{tpu_custom_call.1} parent=5 // pred_check_branch
        %242 = sbr.rel (%p239) target = $region12
      $region11: #{tpu_custom_call.1} parent=5 // pred_region
        %s243 = ssub.s32 %s22, 1
        // Predicated region
        $region13: #{tpu_custom_call.1} parent=11 // pred_check
          %p244 = pneg %p117
        $region14: #{tpu_custom_call.1} parent=11 // pred_check_branch
          %246 = sbr.rel (%p244) target = $region16
        $region15: #{tpu_custom_call.1} parent=11 // pred_region
          _
        $region16: #{tpu_custom_call.1} parent=11 // pred_fallthru
          _
        // Predicated region
        $region17: #{tpu_custom_call.1} parent=11 // pred_check
          %p247 = pneg %p138
        $region18: #{tpu_custom_call.1} parent=11 // pred_check_branch
          %249 = sbr.rel (%p247) target = $region20
        $region19: #{tpu_custom_call.1} parent=11 // pred_region
          _
        $region20: #{tpu_custom_call.1} parent=11 // pred_fallthru
          _
        // Predicated region
        $region21: #{tpu_custom_call.1} parent=11 // pred_check
          %p250 = pneg %p159
        $region22: #{tpu_custom_call.1} parent=11 // pred_check_branch
          %252 = sbr.rel (%p250) target = $region24
        $region23: #{tpu_custom_call.1} parent=11 // pred_region
          _
        $region24: #{tpu_custom_call.1} parent=11 // pred_fallthru
          _
        // Predicated region
        $region25: #{tpu_custom_call.1} parent=11 // pred_check
          %p253 = pneg %p180
        $region26: #{tpu_custom_call.1} parent=11 // pred_check_branch
          %255 = sbr.rel (%p253) target = $region28
        $region27: #{tpu_custom_call.1} parent=11 // pred_region
          _
        $region28: #{tpu_custom_call.1} parent=11 // pred_fallthru
          _
        // Predicated region
        $region29: #{tpu_custom_call.1} parent=11 // pred_check
          %p256 = pneg %p201
        $region30: #{tpu_custom_call.1} parent=11 // pred_check_branch
          %258 = sbr.rel (%p256) target = $region32
        $region31: #{tpu_custom_call.1} parent=11 // pred_region
          _
        $region32: #{tpu_custom_call.1} parent=11 // pred_fallthru
          _
      $region12: #{tpu_custom_call.1} parent=5 // pred_fallthru
        _
      %p259 = scmp.lt.s32.totalorder %s22, 2
      // Predicated region
      $region33: #{tpu_custom_call.1} parent=5 // pred_check
        %p260 = pneg %p259
      $region34: #{tpu_custom_call.1} parent=5 // pred_check_branch
        %262 = sbr.rel (%p260) target = $region36
      $region35: #{tpu_custom_call.1} parent=5 // pred_region
        // Predicated region
        $region37: #{tpu_custom_call.1} parent=35 // pred_check
          %p263 = pneg %p56
        $region38: #{tpu_custom_call.1} parent=35 // pred_check_branch
          %265 = sbr.rel (%p263) target = $region40
        $region39: #{tpu_custom_call.1} parent=35 // pred_region
          %s266 = sand.u32 %s46, 1
          %s267 = scalar_lea.sflag [#allocation3], %s266
          %s268 = sand.u32 %s46, 1
          %s269 = smul.addr %s268, 16
          %s270 = scalar_lea.vmem [#allocation2], %s269
          %s271 = smul.u32 2, %s30
          %s273 = ssub.s32 256, 256
          %274 = vsyncadd %s267, %s273
          %s275 = smul.addr %s29, 2
          %s276 = sadd.s32 %s271, %s275
          %s277 = smul.addr %s276, 128
          %s278 = scalar_lea.hbm %s0, %s277
          %s280 = sshll.u32 %s270, 4
          %s281 = int_to_ptr.vmem [resolvable:$true] %s280
          %283 = dma.hbm_to_vmem [thread:$0]  %s278, 256, %s281, %s267
        $region40: #{tpu_custom_call.1} parent=35 // pred_fallthru
          _
        // Predicated region
        $region41: #{tpu_custom_call.1} parent=35 // pred_check
          %p284 = pneg %p90
        $region42: #{tpu_custom_call.1} parent=35 // pred_check_branch
          %286 = sbr.rel (%p284) target = $region44
        $region43: #{tpu_custom_call.1} parent=35 // pred_region
          %s287 = sand.u32 %s80, 1
          %s288 = scalar_lea.sflag [#allocation6], %s287
          %s289 = sand.u32 %s80, 1
          %s290 = smul.addr %s289, 16
          %s291 = scalar_lea.vmem [#allocation5], %s290
          %s292 = ssub.s32 %s30, 1
          %p293 = scmp.gt.s32.totalorder %s292, 0
          %s294 = scalar_select %p293, %s292, 0
          %s295 = smul.u32 2, %s294
          %s297 = ssub.s32 256, 256
          %298 = vsyncadd %s288, %s297
          %s299 = smul.addr %s29, 2
          %s300 = sadd.s32 %s295, %s299
          %s301 = smul.addr %s300, 128
          %s302 = scalar_lea.hbm %s1, %s301
          %s304 = sshll.u32 %s291, 4
          %s305 = int_to_ptr.vmem [resolvable:$true] %s304
          %307 = dma.hbm_to_vmem [thread:$0]  %s302, 256, %s305, %s288
        $region44: #{tpu_custom_call.1} parent=35 // pred_fallthru
          _
      $region36: #{tpu_custom_call.1} parent=5 // pred_fallthru
        _
      %p308 = scmp.le.s32.totalorder 1, %s22
      %p309 = scmp.lt.s32.totalorder %s22, 3
      %p310 = pnand %p308, %p309
      %p311 = pneg %p310
      // Predicated region
      $region45: #{tpu_custom_call.1} parent=5 // pred_check
        _
      $region46: #{tpu_custom_call.1} parent=5 // pred_check_branch
        %313 = sbr.rel (%p310) target = $region48
      $region47: #{tpu_custom_call.1} parent=5 // pred_region
        %s314 = ssub.s32 %s22, 1
        %s315 = sand.u32 %s49, 1
        %s316 = scalar_lea.sflag [#allocation3], %s315
        %s317 = sand.u32 %s49, 1
        %s318 = smul.addr %s317, 16
        %s319 = scalar_lea.vmem [#allocation2], %s318
        // Predicated region
        $region49: #{tpu_custom_call.1} parent=47 // pred_check
          %p320 = pneg %p62
        $region50: #{tpu_custom_call.1} parent=47 // pred_check_branch
          %322 = sbr.rel (%p320) target = $region52
        $region51: #{tpu_custom_call.1} parent=47 // pred_region
          %323 = dma.done %s316, 256
        $region52: #{tpu_custom_call.1} parent=47 // pred_fallthru
          _
        %s324 = sand.u32 %s83, 1
        %s325 = scalar_lea.sflag [#allocation6], %s324
        %s326 = sand.u32 %s83, 1
        %s327 = smul.addr %s326, 16
        %s328 = scalar_lea.vmem [#allocation5], %s327
        // Predicated region
        $region53: #{tpu_custom_call.1} parent=47 // pred_check
          %p329 = pneg %p96
        $region54: #{tpu_custom_call.1} parent=47 // pred_check_branch
          %331 = sbr.rel (%p329) target = $region56
        $region55: #{tpu_custom_call.1} parent=47 // pred_region
          %332 = dma.done %s325, 256
        $region56: #{tpu_custom_call.1} parent=47 // pred_fallthru
          _
        %s333 = sand.u32 %s49, 1
        %s334 = scalar_lea.sflag [#allocation3], %s333
        %s335 = sand.u32 %s49, 1
        %s336 = smul.addr %s335, 16
        %s337 = scalar_lea.vmem [#allocation2], %s336
        %p338 = pneg %p62
        %p339 = pneg %p59
        %s340 = sand.u32 %s83, 1
        %s341 = scalar_lea.sflag [#allocation6], %s340
        %s342 = sand.u32 %s83, 1
        %s343 = smul.addr %s342, 16
        %s344 = scalar_lea.vmem [#allocation5], %s343
        %p345 = pneg %p96
        %p346 = pneg %p93
        %p347 = pneg %p117
        %p348 = pneg %p114
        %p349 = pneg %p138
        %p350 = pneg %p135
        %p351 = pneg %p159
        %p352 = pneg %p156
        %p353 = pneg %p180
        %p354 = pneg %p177
        %p355 = pneg %p201
        %p356 = pneg %p198
        %p357 = pneg %p229
        %p358 = pneg %p226
        %s359 = sand.u32 %s216, 1
        %s360 = scalar_lea.sflag [#allocation4], %s359
        %s361 = sand.u32 %s216, 1
        %s362 = smul.addr %s361, 16
        %s363 = scalar_lea.vmem [#allocation7], %s362
        %s364 = smul.u32 2, %s32
        %s365 = ssub.s32 %s32, 1
        %p366 = scmp.gt.s32.totalorder %s365, 0
        %s367 = scalar_select %p366, %s365, 0
        %s368 = smul.u32 2, %s367
        %s369 = smul.u32 2, %s32
        %v370 = vld [vmem:[%s319] sm:$0xff]
        %v371 = vld [vmem:[%s319 + $0x8] sm:$0xff]
        %v372 = vld [vmem:[%s328] sm:$0xff]
        %v373 = vld [vmem:[%s328 + $0x8] sm:$0xff]
        %p374 = scmp.gt.s32.totalorder %s32, 0
        %s375 = scalar_select %p374, 1, 0
        %v376 = vstv %s375
        %vm377 = vcmp.eq.s32.totalorder %v376, 1
        %v378 = vsel %vm377, %v372, 0.0
        %v379 = vsel %vm377, %v373, 0.0
        %384 = vrot.lane.b32.xlu0 %v378, 126
        %v385 = vpop.permute.xlu0 %384
        %386 = vrot.lane.b32.xlu0 %v379, 126
        %v387 = vpop.permute.xlu0 %386
        %388 = vrot.lane.b32.xlu0 %v370, 126
        %v389 = vpop.permute.xlu0 %388
        %390 = vrot.lane.b32.xlu0 %v371, 126
        %v391 = vpop.permute.xlu0 %390
        %vm392 = vcmask 1031168
        %v393 = vsel %vm392, %v385, %v387
        %v394 = vsel %vm392, %v387, %v389
        %v395 = vsel %vm392, %v389, %v391
        %396 = vrot.lane.b32.xlu0 %v379, 124
        %v397 = vpop.permute.xlu0 %396
        %398 = vrot.lane.b32.xlu0 %v370, 124
        %v399 = vpop.permute.xlu0 %398
        %400 = vrot.lane.b32.xlu0 %v371, 124
        %v401 = vpop.permute.xlu0 %400
        %vm402 = vcmask 1014784
        %v403 = vsel %vm402, %v397, %v399
        %v404 = vsel %vm402, %v399, %v401
        %v405 = vld [vmem:[%s2] sm:$0xff]
        %v406 = vld [vmem:[%s2 + $0x8] sm:$0xff]
        %407 = vrot.lane.b32.xlu0 %v378, 4
        %v408 = vpop.permute.xlu0 %407
        %409 = vrot.lane.b32.xlu0 %v379, 4
        %v410 = vpop.permute.xlu0 %409
        %411 = vrot.lane.b32.xlu0 %v370, 4
        %v412 = vpop.permute.xlu0 %411
        %413 = vrot.lane.b32.xlu0 %v371, 4
        %v414 = vpop.permute.xlu0 %413
        %415 = vrot.lane.b32.xlu0 %v393, 4
        %v416 = vpop.permute.xlu0 %415
        %417 = vrot.lane.b32.xlu0 %v394, 4
        %v418 = vpop.permute.xlu0 %417
        %419 = vrot.lane.b32.xlu0 %v395, 4
        %v420 = vpop.permute.xlu0 %419
        %421 = vrot.lane.b32.xlu0 %v391, 4
        %v422 = vpop.permute.xlu0 %421
        %423 = vrot.lane.b32.xlu0 %v397, 4
        %v424 = vpop.permute.xlu0 %423
        %425 = vrot.lane.b32.xlu0 %v403, 4
        %v426 = vpop.permute.xlu0 %425
        %427 = vrot.lane.b32.xlu0 %v404, 4
        %v428 = vpop.permute.xlu0 %427
        %429 = vrot.lane.b32.xlu0 %v401, 4
        %v430 = vpop.permute.xlu0 %429
        %vm431 = vcmask 31744
        %v432 = vsel %vm431, %v408, %v410
        %v433 = vsel %vm431, %v410, %v412
        %v434 = vsel %vm431, %v412, %v414
        %v435 = vsel %vm431, %v416, %v418
        %v436 = vsel %vm431, %v418, %v420
        %v437 = vsel %vm431, %v420, %v422
        %v438 = vsel %vm431, %v424, %v426
        %v439 = vsel %vm431, %v426, %v428
        %v440 = vsel %vm431, %v428, %v430
        %vm450 = vcmask 195584
        %v452 = vsel %vm450, %v405, 0
        %v455 = vsel %vm450, %v406, 0
        %457 = vmatprep.subr.mxu0 %v433
        %458 = vmatpush1.msra.mxu0 %v432
        %459 = vmatprep.subr.mxu0 %v436
        %460 = vmatpush1.msra.mxu0 %v435
        %461 = vmatprep.subr.mxu0 %v439
        %462 = vmatpush1.msra.mxu0 %v438
        %463 = vmatprep.subr.mxu0 0.0
        %464 = vmatpush1.msra.mxu0 0.0
        %465 = vmatprep.subr.mxu0 0.0
        %466 = vmatpush1.msra.mxu0 0.0
        %467 = vmatprep.subr.mxu0 0.0
        %468 = vmatpush1.msra.mxu0 0.0
        %469 = vmatprep.subr.mxu0 0.0
        %470 = vmatpush1.msra.mxu0 0.0
        %471 = vmatprep.subr.mxu0 0.0
        %472 = vmatpush1.msra.mxu0 0.0
        %473 = vmatprep.subr.mxu0 0.0
        %474 = vmatpush1.msra.mxu0 0.0
        %475 = vmatprep.subr.mxu0 0.0
        %476 = vmatpush1.msra.mxu0 0.0
        %477 = vmatprep.subr.mxu0 0.0
        %478 = vmatpush1.msra.mxu0 0.0
        %479 = vmatprep.subr.mxu0 0.0
        %480 = vmatpush1.msra.mxu0 0.0
        %481 = vmatprep.subr.mxu0 0.0
        %482 = vmatpush1.msra.mxu0 0.0
        %483 = vmatprep.subr.mxu0 0.0
        %484 = vmatpush1.msra.mxu0 0.0
        %485 = vmatprep.subr.mxu0 0.0
        %486 = vmatpush1.msra.mxu0 0.0
        %487 = vmatprep.subr.mxu0 0.0
        %488 = vmatpush1.msra.mxu0 0.0
        %489 = vmatprep.subr.mxu0 0.0
        %490 = vmatpush1.msra.mxu0 0.0
        %491 = vmatprep.subr.mxu0 0.0
        %492 = vmatpush1.msra.mxu0 0.0
        %493 = vmatprep.subr.mxu0 0.0
        %494 = vmatpush1.msra.mxu0 0.0
        %495 = vmatprep.subr.mxu0 0.0
        %496 = vmatpush1.msra.mxu0 0.0
        %497 = vmatprep.subr.mxu0 0.0
        %498 = vmatpush1.msra.mxu0 0.0
        %499 = vmatprep.subr.mxu0 0.0
        %500 = vmatpush1.msra.mxu0 0.0
        %501 = vmatprep.subr.mxu0 0.0
        %502 = vmatpush1.msra.mxu0 0.0
        %503 = vmatprep.subr.mxu0 0.0
        %504 = vmatpush1.msra.mxu0 0.0
        %505 = vmatprep.subr.mxu0 0.0
        %506 = vmatpush1.msra.mxu0 0.0
        %507 = vmatprep.subr.mxu0 0.0
        %508 = vmatpush1.msra.mxu0 0.0
        %509 = vmatprep.subr.mxu0 0.0
        %510 = vmatpush1.msra.mxu0 0.0
        %511 = vmatprep.subr.mxu0 0.0
        %512 = vmatpush1.msra.mxu0 0.0
        %513 = vmatprep.subr.mxu0 0.0
        %514 = vmatpush1.msra.mxu0 0.0
        %515 = vmatprep.subr.mxu0 0.0
        %516 = vmatpush1.msra.mxu0 0.0
        %517 = vmatprep.subr.mxu0 0.0
        %518 = vmatpush1.msra.mxu0 0.0
        %519 = vmatprep.subr.mxu0 0.0
        %520 = vmatpush1.msra.mxu0 0.0
        %521 = vmatprep.mubr.f32.mxu0 0.0
        %522 = vmatmul.mubr.f32.gmra.mrb[0].mxu0 %v452
        %v523 = vpop.f32.mrb[0].mxu0
        %v524 = vadd.f32 0.0, %v523
        %v525 = vpop.f32.mrb[0].mxu0
        %v526 = vadd.f32 0.0, %v525
        %527 = vmatprep.mubr.f32.mxu0 0.0
        %528 = vmatmul.mubr.f32.gmra.mrb[0].mxu0 %v455
        %v529 = vpop.f32.mrb[0].mxu0
        %v530 = vpop.f32.mrb[0].mxu0
        %v531 = vadd.f32 0.0, %v530
        %532 = vdwg.mxu0
        %533 = vmatprep.subr.mxu0 0.0
        %534 = vmatpush1.msra.mxu0 %v434
        %535 = vmatprep.subr.mxu0 0.0
        %536 = vmatpush1.msra.mxu0 %v437
        %537 = vmatprep.subr.mxu0 0.0
        %538 = vmatpush1.msra.mxu0 %v440
        %539 = vmatprep.subr.mxu0 0.0
        %540 = vmatpush1.msra.mxu0 0.0
        %541 = vmatprep.subr.mxu0 0.0
        %542 = vmatpush1.msra.mxu0 0.0
        %543 = vmatprep.subr.mxu0 0.0
        %544 = vmatpush1.msra.mxu0 0.0
        %545 = vmatprep.subr.mxu0 0.0
        %546 = vmatpush1.msra.mxu0 0.0
        %547 = vmatprep.subr.mxu0 0.0
        %548 = vmatpush1.msra.mxu0 0.0
        %549 = vmatprep.subr.mxu0 0.0
        %550 = vmatpush1.msra.mxu0 0.0
        %551 = vmatprep.subr.mxu0 0.0
        %552 = vmatpush1.msra.mxu0 0.0
        %553 = vmatprep.subr.mxu0 0.0
        %554 = vmatpush1.msra.mxu0 0.0
        %555 = vmatprep.subr.mxu0 0.0
        %556 = vmatpush1.msra.mxu0 0.0
        %557 = vmatprep.subr.mxu0 0.0
        %558 = vmatpush1.msra.mxu0 0.0
        %559 = vmatprep.subr.mxu0 0.0
        %560 = vmatpush1.msra.mxu0 0.0
        %561 = vmatprep.subr.mxu0 0.0
        %562 = vmatpush1.msra.mxu0 0.0
        %563 = vmatprep.subr.mxu0 0.0
        %564 = vmatpush1.msra.mxu0 0.0
        %565 = vmatprep.subr.mxu0 0.0
        %566 = vmatpush1.msra.mxu0 0.0
        %567 = vmatprep.subr.mxu0 0.0
        %568 = vmatpush1.msra.mxu0 0.0
        %569 = vmatprep.subr.mxu0 0.0
        %570 = vmatpush1.msra.mxu0 0.0
        %571 = vmatprep.subr.mxu0 0.0
        %572 = vmatpush1.msra.mxu0 0.0
        %573 = vmatprep.subr.mxu0 0.0
        %574 = vmatpush1.msra.mxu0 0.0
        %575 = vmatprep.subr.mxu0 0.0
        %576 = vmatpush1.msra.mxu0 0.0
        %577 = vmatprep.subr.mxu0 0.0
        %578 = vmatpush1.msra.mxu0 0.0
        %579 = vmatprep.subr.mxu0 0.0
        %580 = vmatpush1.msra.mxu0 0.0
        %581 = vmatprep.subr.mxu0 0.0
        %582 = vmatpush1.msra.mxu0 0.0
        %583 = vmatprep.subr.mxu0 0.0
        %584 = vmatpush1.msra.mxu0 0.0
        %585 = vmatprep.subr.mxu0 0.0
        %586 = vmatpush1.msra.mxu0 0.0
        %587 = vmatprep.subr.mxu0 0.0
        %588 = vmatpush1.msra.mxu0 0.0
        %589 = vmatprep.subr.mxu0 0.0
        %590 = vmatpush1.msra.mxu0 0.0
        %591 = vmatprep.subr.mxu0 0.0
        %592 = vmatpush1.msra.mxu0 0.0
        %593 = vmatprep.subr.mxu0 0.0
        %594 = vmatpush1.msra.mxu0 0.0
        %595 = vmatprep.subr.mxu0 0.0
        %596 = vmatpush1.msra.mxu0 0.0
        %597 = vmatprep.mubr.f32.mxu0 0.0
        %598 = vmatmul.mubr.f32.gmra.mrb[0].mxu0 %v452
        %v599 = vpop.f32.mrb[0].mxu0
        %v600 = vadd.f32 0.0, %v599
        %v601 = vpop.f32.mrb[0].mxu0
        %602 = vmatprep.mubr.f32.mxu0 0.0
        %603 = vmatmul.mubr.f32.gmra.mrb[0].mxu0 %v455
        %v604 = vpop.f32.mrb[0].mxu0
        %v605 = vadd.f32 0.0, %v604
        %v606 = vpop.f32.mrb[0].mxu0
        %607 = vdwg.mxu0
        %v608 = vld [vmem:[%s6] sm:$0xff]
        %610 = vset.pattern.permute.xlu0 0
        %611 = vperm.xlu0 %610, %v608
        %v612 = vpop.permute.xlu0 %611
        %v614 = vadd.f32 %v531, %v612
        %v615 = vadd.f32 %v605, %v612
        %v616 = vld [vmem:[%s3] sm:$0xff]
        %618 = vset.pattern.permute.xlu0 0
        %619 = vperm.xlu0 %618, %v616
        %v620 = vpop.permute.xlu0 %619
        %v622 = vadd.f32 %v524, %v620
        %v623 = vadd.f32 %v526, %v620
        %v624 = vadd.f32 %v600, %v620
        %v625 = vmax.f32 %v622, 0.0
        %v626 = vmax.f32 %v623, 0.0
        %v627 = vmax.f32 %v624, 0.0
        %v628 = vlaneseq
        %v629 = vand.u32 %v628, 127
        %v630 = vadd.s32 %v629, 128
        %v631 = vadd.s32 %v629, 256
        %s632 = smul.u32 %s32, 256
        %s633 = ssub.s32 128, %s632
        %v634 = vstv %s633
        %vm635 = vcmp.ge.s32.totalorder %v629, %v634
        %vm636 = vcmp.ge.s32.totalorder %v630, %v634
        %vm637 = vcmp.ge.s32.totalorder %v631, %v634
        %v638 = vsel %vm635, 1, 0
        %v639 = vsel %vm636, 1, 0
        %v640 = vsel %vm637, 1, 0
        %vm641 = vcmp.eq.s32.totalorder %v638, 1
        %vm642 = vcmp.eq.s32.totalorder %v639, 1
        %vm643 = vcmp.eq.s32.totalorder %v640, 1
        %v644 = vsel %vm641, %v625, 0.0
        %v645 = vsel %vm642, %v626, 0.0
        %v646 = vsel %vm643, %v627, 0.0
        %650 = vrot.lane.b32.xlu0 %v644, 126
        %v651 = vpop.permute.xlu0 %650
        %652 = vrot.lane.b32.xlu0 %v645, 126
        %v653 = vpop.permute.xlu0 %652
        %654 = vrot.lane.b32.xlu0 %v646, 126
        %v655 = vpop.permute.xlu0 %654
        %v656 = vsel %vm392, %v651, %v653
        %v657 = vsel %vm392, %v653, %v655
        %658 = vrot.lane.b32.xlu0 %v645, 124
        %v659 = vpop.permute.xlu0 %658
        %660 = vrot.lane.b32.xlu0 %v646, 124
        %v661 = vpop.permute.xlu0 %660
        %v662 = vsel %vm402, %v659, %v661
        %v663 = vld [vmem:[%s4] sm:$0xff]
        %v664 = vld [vmem:[%s5] sm:$0xff]
        %666 = vset.pattern.permute.xlu0 0
        %667 = vperm.xlu0 %666, %v664
        %v668 = vpop.permute.xlu0 %667
        %670 = vrot.lane.b32.xlu0 %v644, 4
        %v671 = vpop.permute.xlu0 %670
        %672 = vrot.lane.b32.xlu0 %v645, 4
        %v673 = vpop.permute.xlu0 %672
        %674 = vrot.lane.b32.xlu0 %v646, 4
        %v675 = vpop.permute.xlu0 %674
        %676 = vrot.lane.b32.xlu0 %v656, 4
        %v677 = vpop.permute.xlu0 %676
        %678 = vrot.lane.b32.xlu0 %v657, 4
        %v679 = vpop.permute.xlu0 %678
        %680 = vrot.lane.b32.xlu0 %v655, 4
        %v681 = vpop.permute.xlu0 %680
        %682 = vrot.lane.b32.xlu0 %v659, 4
        %v683 = vpop.permute.xlu0 %682
        %684 = vrot.lane.b32.xlu0 %v662, 4
        %v685 = vpop.permute.xlu0 %684
        %686 = vrot.lane.b32.xlu0 %v661, 4
        %v687 = vpop.permute.xlu0 %686
        %v688 = vsel %vm431, %v671, %v673
        %v689 = vsel %vm431, %v673, %v675
        %v690 = vsel %vm431, %v677, %v679
        %v691 = vsel %vm431, %v679, %v681
        %v692 = vsel %vm431, %v683, %v685
        %v693 = vsel %vm431, %v685, %v687
        %v701 = vsel %vm450, %v663, 0
        %703 = vmatprep.subr.mxu0 %v689
        %704 = vmatpush1.msra.mxu0 %v688
        %705 = vmatprep.subr.mxu0 %v691
        %706 = vmatpush1.msra.mxu0 %v690
        %707 = vmatprep.subr.mxu0 %v693
        %708 = vmatpush1.msra.mxu0 %v692
        %709 = vmatprep.subr.mxu0 0.0
        %710 = vmatpush1.msra.mxu0 0.0
        %711 = vmatprep.subr.mxu0 0.0
        %712 = vmatpush1.msra.mxu0 0.0
        %713 = vmatprep.subr.mxu0 0.0
        %714 = vmatpush1.msra.mxu0 0.0
        %715 = vmatprep.subr.mxu0 0.0
        %716 = vmatpush1.msra.mxu0 0.0
        %717 = vmatprep.subr.mxu0 0.0
        %718 = vmatpush1.msra.mxu0 0.0
        %719 = vmatprep.subr.mxu0 0.0
        %720 = vmatpush1.msra.mxu0 0.0
        %721 = vmatprep.subr.mxu0 0.0
        %722 = vmatpush1.msra.mxu0 0.0
        %723 = vmatprep.subr.mxu0 0.0
        %724 = vmatpush1.msra.mxu0 0.0
        %725 = vmatprep.subr.mxu0 0.0
        %726 = vmatpush1.msra.mxu0 0.0
        %727 = vmatprep.subr.mxu0 0.0
        %728 = vmatpush1.msra.mxu0 0.0
        %729 = vmatprep.subr.mxu0 0.0
        %730 = vmatpush1.msra.mxu0 0.0
        %731 = vmatprep.subr.mxu0 0.0
        %732 = vmatpush1.msra.mxu0 0.0
        %733 = vmatprep.subr.mxu0 0.0
        %734 = vmatpush1.msra.mxu0 0.0
        %735 = vmatprep.subr.mxu0 0.0
        %736 = vmatpush1.msra.mxu0 0.0
        %737 = vmatprep.subr.mxu0 0.0
        %738 = vmatpush1.msra.mxu0 0.0
        %739 = vmatprep.subr.mxu0 0.0
        %740 = vmatpush1.msra.mxu0 0.0
        %741 = vmatprep.subr.mxu0 0.0
        %742 = vmatpush1.msra.mxu0 0.0
        %743 = vmatprep.subr.mxu0 0.0
        %744 = vmatpush1.msra.mxu0 0.0
        %745 = vmatprep.subr.mxu0 0.0
        %746 = vmatpush1.msra.mxu0 0.0
        %747 = vmatprep.subr.mxu0 0.0
        %748 = vmatpush1.msra.mxu0 0.0
        %749 = vmatprep.subr.mxu0 0.0
        %750 = vmatpush1.msra.mxu0 0.0
        %751 = vmatprep.subr.mxu0 0.0
        %752 = vmatpush1.msra.mxu0 0.0
        %753 = vmatprep.subr.mxu0 0.0
        %754 = vmatpush1.msra.mxu0 0.0
        %755 = vmatprep.subr.mxu0 0.0
        %756 = vmatpush1.msra.mxu0 0.0
        %757 = vmatprep.subr.mxu0 0.0
        %758 = vmatpush1.msra.mxu0 0.0
        %759 = vmatprep.subr.mxu0 0.0
        %760 = vmatpush1.msra.mxu0 0.0
        %761 = vmatprep.subr.mxu0 0.0
        %762 = vmatpush1.msra.mxu0 0.0
        %763 = vmatprep.subr.mxu0 0.0
        %764 = vmatpush1.msra.mxu0 0.0
        %765 = vmatprep.subr.mxu0 0.0
        %766 = vmatpush1.msra.mxu0 0.0
        %767 = vmatprep.mubr.f32.mxu0 0.0
        %768 = vmatmul.mubr.f32.gmra.mrb[0].mxu0 %v701
        %v769 = vpop.f32.mrb[0].mxu0
        %v770 = vadd.f32 %v668, %v769
        %v771 = vpop.f32.mrb[0].mxu0
        %v772 = vadd.f32 %v668, %v771
        %773 = vdwg.mxu0
        %v774 = vmax.f32 %v770, 0.0
        %v775 = vmax.f32 %v772, 0.0
        %v776 = vadd.f32 %v774, %v614
        %v777 = vadd.f32 %v775, %v615
        %778 = vst [vmem:[%s363] sm:$0xff] %v776
        %779 = vst [vmem:[%s363 + $0x8] sm:$0xff] %v777
        %s780 = sand.u32 %s216, 1
        %s781 = scalar_lea.sflag [#allocation4], %s780
        %s782 = sand.u32 %s216, 1
        %s783 = smul.addr %s782, 16
        %s784 = scalar_lea.vmem [#allocation7], %s783
        // Predicated region
        $region57: #{tpu_custom_call.1} parent=47 // pred_check
          %p785 = pneg %p226
        $region58: #{tpu_custom_call.1} parent=47 // pred_check_branch
          %787 = sbr.rel (%p785) target = $region60
        $region59: #{tpu_custom_call.1} parent=47 // pred_region
          %s788 = smul.u32 2, %s32
          %s790 = ssub.s32 256, 256
          %791 = vsyncadd %s781, %s790
          %s792 = smul.addr %s31, 2
          %s793 = sadd.s32 %s788, %s792
          %s794 = smul.addr %s793, 128
          %s795 = scalar_lea.hbm %s7, %s794
          %s797 = sshll.u32 %s784, 4
          %s798 = int_to_ptr.vmem [resolvable:$true] %s797
          %800 = dma.vmem_to_hbm [thread:$0]  %s798, 256, %s795, %s781
        $region60: #{tpu_custom_call.1} parent=47 // pred_fallthru
          _
      $region48: #{tpu_custom_call.1} parent=5 // pred_fallthru
        _
      %p801 = scmp.le.s32.totalorder 2, %s22
      // Predicated region
      $region61: #{tpu_custom_call.1} parent=5 // pred_check
        %p802 = pneg %p801
      $region62: #{tpu_custom_call.1} parent=5 // pred_check_branch
        %804 = sbr.rel (%p802) target = $region64
      $region63: #{tpu_custom_call.1} parent=5 // pred_region
        %s805 = ssub.s32 %s22, 2
        // Predicated region
        $region65: #{tpu_custom_call.1} parent=63 // pred_check
          %p806 = pneg %p232
        $region66: #{tpu_custom_call.1} parent=63 // pred_check_branch
          %808 = sbr.rel (%p806) target = $region68
        $region67: #{tpu_custom_call.1} parent=63 // pred_region
          %s809 = sand.u32 %s217, 1
          %s810 = scalar_lea.sflag [#allocation4], %s809
          %s811 = sand.u32 %s217, 1
          %s812 = smul.addr %s811, 16
          %s813 = scalar_lea.vmem [#allocation7], %s812
          %814 = dma.done %s810, 256
        $region68: #{tpu_custom_call.1} parent=63 // pred_fallthru
          _
      $region64: #{tpu_custom_call.1} parent=5 // pred_fallthru
        _
    $region6: #{tpu_custom_call.1} parent=1 // loop_footer
      %s26 = sadd.s32 1, %s22
    $region7: #{tpu_custom_call.1} parent=1 // loop_footer_branch
      %21 = sbr.rel target = $region3
    $region8: #{tpu_custom_call.1} parent=1 // loop_exit
      _
    %815 = vsyncpa [#allocation3], 1
    %s816 = scalar_lea.sflag [#allocation3], 1
    %817 = vsyncpa %s816, 1
    %818 = vsyncpa [#allocation6], 1
    %s819 = scalar_lea.sflag [#allocation6], 1
    %820 = vsyncpa %s819, 1
    %821 = vsyncpa [#allocation4], 1
    %s822 = scalar_lea.sflag [#allocation4], 1
    %823 = vsyncpa %s822, 1

</llo_original>
